<compile_context>
chip_gen: v6e
topology: v6e:2x2x1
jax: 0.10.0
libtpu: 0.0.40
codegen_flags: <defaults>
</compile_context>

<pallas_src>
import functools

import jax
import jax.numpy as jnp
from jax.experimental import pallas as pl
from jax.experimental.pallas import tpu as pltpu

LANE = 128  # TPU lane width; pad every feature dim to this


def _round_up(x: int, m: int) -> int:
    return (x + m - 1) // m * m


def mlp_kernel(x_ref, w1_ref, b1_ref, w2_ref, b2_ref, o_ref):
    # Hidden layer: h = tanh(x @ W1 + b1)  (MXU matmul, f32 accumulate)
    h = jnp.tanh(
        jnp.dot(x_ref[...], w1_ref[...], preferred_element_type=jnp.float32)
        + b1_ref[...]
    )
    # Dropout -> identity (eval mode)
    # Classifier: y = h @ W2 + b2
    y = (
        jnp.dot(h, w2_ref[...], preferred_element_type=jnp.float32)
        + b2_ref[...]
    )
    o_ref[...] = y.astype(o_ref.dtype)


@functools.partial(jax.jit, static_argnames=())
def classification_forward(x, w1, b1, w2, b2):
    """x: (B, num_inputs); w1: (num_inputs, n_hidden); b1: (1, n_hidden);
    w2: (n_hidden, num_outputs); b2: (1, num_outputs).
    Weights are stored pre-transposed as (in, out) so the kernel does
    x @ W + b with no in-kernel transpose."""
    B, num_inputs = x.shape
    n_hidden = w1.shape[1]
    num_outputs = w2.shape[1]

    # ---- Lane-dense padding (feature dims -> 128) -------------------------
    D = _round_up(num_inputs, LANE)
    H = _round_up(n_hidden, LANE)
    O = _round_up(num_outputs, LANE)

    # ---- Batch tiling ------------------------------------------------------
    # TB: multiple of 8 (sublane), capped at 512 rows so double-buffered
    # (TB,128) f32 blocks stay far below v7x's 64 MiB VMEM.
    TB = min(_round_up(B, 8), 512)
    B_pad = _round_up(B, TB)
    n_tiles = B_pad // TB

    # Zero-pad everything. Zero w2 rows (and zero b1 padding) make the padded
    # hidden lanes (tanh(0)=0) contribute nothing; zero w2/b2 columns make the
    # padded output lanes exactly 0 (and are sliced off anyway).
    x_p = jnp.pad(x, ((0, B_pad - B), (0, D - num_inputs)))
    w1_p = jnp.pad(w1, ((0, D - num_inputs), (0, H - n_hidden)))
    b1_p = jnp.pad(b1, ((0, 0), (0, H - n_hidden)))
    w2_p = jnp.pad(w2, ((0, H - n_hidden), (0, O - num_outputs)))
    b2_p = jnp.pad(b2, ((0, 0), (0, O - num_outputs)))

    bytes_accessed = 4 * (
        B_pad * D + D * H + H + H * O + O + B_pad * O
    )
    cost = pl.CostEstimate(
        flops=2 * B_pad * (D * H + H * O),
        transcendentals=B_pad * H,
        bytes_accessed=bytes_accessed,
    )

    out_padded = pl.pallas_call(
        mlp_kernel,
        out_shape=jax.ShapeDtypeStruct((B_pad, O), x.dtype),
        grid=(n_tiles,),
        in_specs=[
            pl.BlockSpec((TB, D), lambda i: (i, 0)),   # x: tiled over batch
            pl.BlockSpec((D, H), lambda i: (0, 0)),    # w1: resident
            pl.BlockSpec((1, H), lambda i: (0, 0)),    # b1: resident
            pl.BlockSpec((H, O), lambda i: (0, 0)),    # w2: resident
            pl.BlockSpec((1, O), lambda i: (0, 0)),    # b2: resident
        ],
        out_specs=pl.BlockSpec((TB, O), lambda i: (i, 0)),
        compiler_params=pltpu.CompilerParams(
            dimension_semantics=("parallel",),
        ),
        cost_estimate=cost,
    )(x_p, w1_p, b1_p, w2_p, b2_p)

    # Slice back to the logical shape.
    return out_padded[:B, :num_outputs]


def init_params(key, num_inputs=10, n_hidden=10, num_outputs=3):
    """Deterministic init mimicking torch.nn.Linear default
    (uniform(-1/sqrt(fan_in), 1/sqrt(fan_in))). Weights stored as (in, out)."""
    k1, k2, k3, k4 = jax.random.split(key, 4)
    bound1 = 1.0 / jnp.sqrt(jnp.float32(num_inputs))
    bound2 = 1.0 / jnp.sqrt(jnp.float32(n_hidden))
    w1 = jax.random.uniform(k1, (num_inputs, n_hidden), jnp.float32, -bound1, bound1)
    b1 = jax.random.uniform(k2, (1, n_hidden), jnp.float32, -bound1, bound1)
    w2 = jax.random.uniform(k3, (n_hidden, num_outputs), jnp.float32, -bound2, bound2)
    b2 = jax.random.uniform(k4, (1, num_outputs), jnp.float32, -bound2, bound2)
    return w1, b1, w2, b2


if __name__ == "__main__":
    key = jax.random.PRNGKey(0)
    k_x, k_p = jax.random.split(key)

    B, num_inputs, n_hidden, num_outputs = 8, 10, 10, 3
    x = jax.random.normal(k_x, (B, num_inputs), dtype=jnp.float32)
    w1, b1, w2, b2 = init_params(k_p, num_inputs, n_hidden, num_outputs)

    out = classification_forward(x, w1, b1, w2, b2)
    out = jax.block_until_ready(out)

    # Pure-JAX reference check (dropout = identity at eval)
    ref = jnp.tanh(x @ w1 + b1) @ w2 + b2
    assert out.shape == (B, num_outputs)
    assert jnp.allclose(out, ref, atol=1e-5, rtol=1e-5)

    # Also exercise a larger, multi-tile batch to validate the batched path.
    B2 = 1000
    x2 = jax.random.normal(jax.random.PRNGKey(1), (B2, num_inputs), jnp.float32)
    out2 = jax.block_until_ready(classification_forward(x2, w1, b1, w2, b2))
    ref2 = jnp.tanh(x2 @ w1 + b1) @ w2 + b2
    assert out2.shape == (B2, num_outputs)
    assert jnp.allclose(out2, ref2, atol=1e-5, rtol=1e-5)

    print("KERNEL_OK")
</pallas_src>

<mosaic_0001>
module attributes {stable_mosaic.version = 11 : i64} {
  func.func @mlp_kernel(%arg0: i32, %arg1: memref<8x128xf32, #tpu.memory_space<vmem>>, %arg2: memref<128x128xf32, #tpu.memory_space<vmem>>, %arg3: memref<1x128xf32, #tpu.memory_space<vmem>>, %arg4: memref<128x128xf32, #tpu.memory_space<vmem>>, %arg5: memref<1x128xf32, #tpu.memory_space<vmem>>, %arg6: memref<8x128xf32, #tpu.memory_space<vmem>>) attributes {dimension_semantics = [#tpu.dimension_semantics<parallel>], iteration_bounds = array<i64: 1>, scalar_prefetch = 0 : i64, scratch_operands = 0 : i64, tpu.core_type = #tpu.core_type<tc>, window_params = [{transform_indices = @transform_0, window_bounds = array<i64: 8, 128>}, {pipeline_mode = #tpu.pipeline_mode<synchronous>, transform_indices = @transform_1, window_bounds = array<i64: 128, 128>}, {pipeline_mode = #tpu.pipeline_mode<synchronous>, transform_indices = @transform_2, window_bounds = array<i64: 1, 128>}, {pipeline_mode = #tpu.pipeline_mode<synchronous>, transform_indices = @transform_3, window_bounds = array<i64: 128, 128>}, {pipeline_mode = #tpu.pipeline_mode<synchronous>, transform_indices = @transform_4, window_bounds = array<i64: 1, 128>}, {transform_indices = @transform_5, window_bounds = array<i64: 8, 128>}]} {
    %c0 = arith.constant 0 : index
    %c0_0 = arith.constant 0 : index
    %0 = vector.load %arg1[%c0, %c0_0] : memref<8x128xf32, #tpu.memory_space<vmem>>, vector<8x128xf32>
    %c0_1 = arith.constant 0 : index
    %c0_2 = arith.constant 0 : index
    %1 = vector.load %arg2[%c0_1, %c0_2] : memref<128x128xf32, #tpu.memory_space<vmem>>, vector<128x128xf32>
    %cst = arith.constant dense<0.000000e+00> : vector<8x128xf32>
    %2 = tpu.matmul %0, %1, %cst {dimension_numbers = #tpu.dot_dimension_numbers<[1], [0], [0], [1], [0, 0, 1, 1], [], []>} : vector<8x128xf32>, vector<128x128xf32>, vector<8x128xf32> -> vector<8x128xf32>
    %c0_3 = arith.constant 0 : index
    %c0_4 = arith.constant 0 : index
    %3 = vector.load %arg3[%c0_3, %c0_4] : memref<1x128xf32, #tpu.memory_space<vmem>>, vector<1x128xf32>
    %4 = vector.broadcast %3 : vector<1x128xf32> to vector<8x128xf32>
    %5 = arith.addf %2, %4 : vector<8x128xf32>
    %6 = math.tanh %5 : vector<8x128xf32>
    %c0_5 = arith.constant 0 : index
    %c0_6 = arith.constant 0 : index
    %7 = vector.load %arg4[%c0_5, %c0_6] : memref<128x128xf32, #tpu.memory_space<vmem>>, vector<128x128xf32>
    %cst_7 = arith.constant dense<0.000000e+00> : vector<8x128xf32>
    %8 = tpu.matmul %6, %7, %cst_7 {dimension_numbers = #tpu.dot_dimension_numbers<[1], [0], [0], [1], [0, 0, 1, 1], [], []>} : vector<8x128xf32>, vector<128x128xf32>, vector<8x128xf32> -> vector<8x128xf32>
    %c0_8 = arith.constant 0 : index
    %c0_9 = arith.constant 0 : index
    %9 = vector.load %arg5[%c0_8, %c0_9] : memref<1x128xf32, #tpu.memory_space<vmem>>, vector<1x128xf32>
    %10 = vector.broadcast %9 : vector<1x128xf32> to vector<8x128xf32>
    %11 = arith.addf %8, %10 : vector<8x128xf32>
    %c0_10 = arith.constant 0 : index
    %c0_11 = arith.constant 0 : index
    %12 = vector.load %arg6[%c0_10, %c0_11] : memref<8x128xf32, #tpu.memory_space<vmem>>, vector<8x128xf32>
    tpu.vector_store %arg6[%c0_10, %c0_11], %11 {strides = array<i32>} : memref<8x128xf32, #tpu.memory_space<vmem>>, vector<8x128xf32>,
    return
  }
  func.func @transform_0(%arg0: i32) -> (i32, i32) {
    %c0_i32 = arith.constant 0 : i32
    %c0_i32_0 = arith.constant 0 : i32
    return %arg0, %c0_i32 : i32, i32
  }
  func.func @transform_1(%arg0: i32) -> (i32, i32) {
    %c0_i32 = arith.constant 0 : i32
    %c0_i32_0 = arith.constant 0 : i32
    %c0_i32_1 = arith.constant 0 : i32
    return %c0_i32, %c0_i32_0 : i32, i32
  }
  func.func @transform_2(%arg0: i32) -> (i32, i32) {
    %c0_i32 = arith.constant 0 : i32
    %c0_i32_0 = arith.constant 0 : i32
    %c0_i32_1 = arith.constant 0 : i32
    return %c0_i32, %c0_i32_0 : i32, i32
  }
  func.func @transform_3(%arg0: i32) -> (i32, i32) {
    %c0_i32 = arith.constant 0 : i32
    %c0_i32_0 = arith.constant 0 : i32
    %c0_i32_1 = arith.constant 0 : i32
    return %c0_i32, %c0_i32_0 : i32, i32
  }
  func.func @transform_4(%arg0: i32) -> (i32, i32) {
    %c0_i32 = arith.constant 0 : i32
    %c0_i32_0 = arith.constant 0 : i32
    %c0_i32_1 = arith.constant 0 : i32
    return %c0_i32, %c0_i32_0 : i32, i32
  }
  func.func @transform_5(%arg0: i32) -> (i32, i32) {
    %c0_i32 = arith.constant 0 : i32
    %c0_i32_0 = arith.constant 0 : i32
    return %arg0, %c0_i32 : i32, i32
  }
}

</mosaic_0001>

<llo_original>
// kernel: classification_forward.1
$region0: #{classification_forward.1}
  #allocation0 [shape = 'u32[]', space=smem, size = 0x4, offset = 0x4, fixed_abs, tag = 'smem constant byte address 0x4 - core index']
  #allocation1 [shape = 'u32[144,128]{1,0:T(1,128)}', space=vmem, size = 0x12000, scoped, tag = 'internal scratch']
  %s0 = inlined_call_operand.vmem [shape: f32[8,128], index: 0, kind: input, shape index: {}]
  %s1 = inlined_call_operand.vmem [shape: f32[128,128], index: 1, kind: input, shape index: {}]
  %s2 = inlined_call_operand.vmem [shape: f32[1,128], index: 2, kind: input, shape index: {}]
  %s3 = inlined_call_operand.vmem [shape: f32[128,128], index: 3, kind: input, shape index: {}]
  %s4 = inlined_call_operand.vmem [shape: f32[1,128], index: 4, kind: input, shape index: {}]
  %s5 = inlined_call_operand.vmem [shape: f32[8,128], index: 5, kind: output, shape index: {}]
  %s6 = sld [smem:[#allocation0]]
  $region30: #{classification_forward.1} parent=0
    _
  %s8 = ssub.s32 1, %s6
  %s9 = scalar_select 0, %s8, %s6
  // Predicated region
  $region2: #{classification_forward.1} parent=0 // pred_check
    _
  $region3: #{classification_forward.1} parent=0 // pred_check_branch
    %11 = sbr.rel (0) target = $region5
  $region4: #{classification_forward.1} parent=0 // pred_region
    _
  $region5: #{classification_forward.1} parent=0 // pred_fallthru
    _
  // Predicated region
  $region6: #{classification_forward.1} parent=0 // pred_check
    _
  $region7: #{classification_forward.1} parent=0 // pred_check_branch
    %13 = sbr.rel (0) target = $region9
  $region8: #{classification_forward.1} parent=0 // pred_region
    _
  $region9: #{classification_forward.1} parent=0 // pred_fallthru
    _
  // Predicated region
  $region10: #{classification_forward.1} parent=0 // pred_check
    _
  $region11: #{classification_forward.1} parent=0 // pred_check_branch
    %15 = sbr.rel (0) target = $region13
  $region12: #{classification_forward.1} parent=0 // pred_region
    _
  $region13: #{classification_forward.1} parent=0 // pred_fallthru
    _
  // Predicated region
  $region14: #{classification_forward.1} parent=0 // pred_check
    _
  $region15: #{classification_forward.1} parent=0 // pred_check_branch
    %17 = sbr.rel (0) target = $region17
  $region16: #{classification_forward.1} parent=0 // pred_region
    _
  $region17: #{classification_forward.1} parent=0 // pred_fallthru
    _
  // Predicated region
  $region18: #{classification_forward.1} parent=0 // pred_check
    _
  $region19: #{classification_forward.1} parent=0 // pred_check_branch
    %19 = sbr.rel (0) target = $region21
  $region20: #{classification_forward.1} parent=0 // pred_region
    _
  $region21: #{classification_forward.1} parent=0 // pred_fallthru
    _
  %v20 = vld [vmem:[%s0] sm:$0xff]
  %v21 = vld [vmem:[%s1] sm:$0xff]
  %v22 = vld [vmem:[%s1 + $0x8] sm:$0xff]
  %v23 = vld [vmem:[%s1 + $0x10] sm:$0xff]
  %v24 = vld [vmem:[%s1 + $0x18] sm:$0xff]
  %v25 = vld [vmem:[%s1 + $0x20] sm:$0xff]
  %v26 = vld [vmem:[%s1 + $0x28] sm:$0xff]
  %v27 = vld [vmem:[%s1 + $0x30] sm:$0xff]
  %v28 = vld [vmem:[%s1 + $0x38] sm:$0xff]
  %v29 = vld [vmem:[%s1 + $0x40] sm:$0xff]
  %v30 = vld [vmem:[%s1 + $0x48] sm:$0xff]
  %v31 = vld [vmem:[%s1 + $0x50] sm:$0xff]
  %v32 = vld [vmem:[%s1 + $0x58] sm:$0xff]
  %v33 = vld [vmem:[%s1 + $0x60] sm:$0xff]
  %v34 = vld [vmem:[%s1 + $0x68] sm:$0xff]
  %v35 = vld [vmem:[%s1 + $0x70] sm:$0xff]
  %v36 = vld [vmem:[%s1 + $0x78] sm:$0xff]
  %v37 = vld [vmem:[%s2] sm:$0x1]
  %v39 = vlaneseq
  %v40 = vshrl.u32 %v39, 7
  %v41 = vsub.s32 0, %v40
  %v42 = vrot.slane %v37, %v41
  %44 = vmatprep.subr.mxu0 0.0
  %45 = vmatpush1.msra.mxu0 %v36
  %46 = vmatprep.subr.mxu0 0.0
  %47 = vmatpush1.msra.mxu0 %v35
  %48 = vmatprep.subr.mxu0 0.0
  %49 = vmatpush1.msra.mxu0 %v34
  %50 = vmatprep.subr.mxu0 0.0
  %51 = vmatpush1.msra.mxu0 %v33
  %52 = vmatprep.subr.mxu0 0.0
  %53 = vmatpush1.msra.mxu0 %v32
  %54 = vmatprep.subr.mxu0 0.0
  %55 = vmatpush1.msra.mxu0 %v31
  %56 = vmatprep.subr.mxu0 0.0
  %57 = vmatpush1.msra.mxu0 %v30
  %58 = vmatprep.subr.mxu0 0.0
  %59 = vmatpush1.msra.mxu0 %v29
  %60 = vmatprep.subr.mxu0 0.0
  %61 = vmatpush1.msra.mxu0 %v28
  %62 = vmatprep.subr.mxu0 0.0
  %63 = vmatpush1.msra.mxu0 %v27
  %64 = vmatprep.subr.mxu0 0.0
  %65 = vmatpush1.msra.mxu0 %v26
  %66 = vmatprep.subr.mxu0 0.0
  %67 = vmatpush1.msra.mxu0 %v25
  %68 = vmatprep.subr.mxu0 0.0
  %69 = vmatpush1.msra.mxu0 %v24
  %70 = vmatprep.subr.mxu0 0.0
  %71 = vmatpush1.msra.mxu0 %v23
  %72 = vmatprep.subr.mxu0 0.0
  %73 = vmatpush1.msra.mxu0 %v22
  %74 = vmatprep.subr.mxu0 0.0
  %75 = vmatpush1.msra.mxu0 %v21
  %76 = vmatprep.subr.mxu0 0.0
  %77 = vmatpush2.msra.mxu0 0.0
  %78 = vmatprep.subr.mxu0 0.0
  %79 = vmatpush2.msra.mxu0 0.0
  %80 = vmatprep.subr.mxu0 0.0
  %81 = vmatpush2.msra.mxu0 0.0
  %82 = vmatprep.subr.mxu0 0.0
  %83 = vmatpush2.msra.mxu0 0.0
  %84 = vmatprep.subr.mxu0 0.0
  %85 = vmatpush2.msra.mxu0 0.0
  %86 = vmatprep.subr.mxu0 0.0
  %87 = vmatpush2.msra.mxu0 0.0
  %88 = vmatprep.subr.mxu0 0.0
  %89 = vmatpush2.msra.mxu0 0.0
  %90 = vmatprep.subr.mxu0 0.0
  %91 = vmatpush2.msra.mxu0 0.0
  %92 = vmatprep.subr.mxu0 0.0
  %93 = vmatpush2.msra.mxu0 0.0
  %94 = vmatprep.subr.mxu0 0.0
  %95 = vmatpush2.msra.mxu0 0.0
  %96 = vmatprep.subr.mxu0 0.0
  %97 = vmatpush2.msra.mxu0 0.0
  %98 = vmatprep.subr.mxu0 0.0
  %99 = vmatpush2.msra.mxu0 0.0
  %100 = vmatprep.subr.mxu0 0.0
  %101 = vmatpush2.msra.mxu0 0.0
  %102 = vmatprep.subr.mxu0 0.0
  %103 = vmatpush2.msra.mxu0 0.0
  %104 = vmatprep.subr.mxu0 0.0
  %105 = vmatpush2.msra.mxu0 0.0
  %106 = vmatprep.subr.mxu0 0.0
  %107 = vmatpush2.msra.mxu0 0.0
  %108 = vmatprep.mubr.f32.mxu0 0.0
  %109 = vmatmul.mubr.f32.gmra.mxu0 %v20
  %v110 = vpop.f32.mrf.mxu0
  %v111 = vadd.f32 %v42, %v110
  %v112 = vpop.f32.mrf.mxu0
  %113 = vdwg.mxu0
  %v114 = vtanh.pop %v111
  %v115 = vld [vmem:[%s3] sm:$0xff]
  %v116 = vld [vmem:[%s3 + $0x8] sm:$0xff]
  %v117 = vld [vmem:[%s3 + $0x10] sm:$0xff]
  %v118 = vld [vmem:[%s3 + $0x18] sm:$0xff]
  %v119 = vld [vmem:[%s3 + $0x20] sm:$0xff]
  %v120 = vld [vmem:[%s3 + $0x28] sm:$0xff]
  %v121 = vld [vmem:[%s3 + $0x30] sm:$0xff]
  %v122 = vld [vmem:[%s3 + $0x38] sm:$0xff]
  %v123 = vld [vmem:[%s3 + $0x40] sm:$0xff]
  %v124 = vld [vmem:[%s3 + $0x48] sm:$0xff]
  %v125 = vld [vmem:[%s3 + $0x50] sm:$0xff]
  %v126 = vld [vmem:[%s3 + $0x58] sm:$0xff]
  %v127 = vld [vmem:[%s3 + $0x60] sm:$0xff]
  %v128 = vld [vmem:[%s3 + $0x68] sm:$0xff]
  %v129 = vld [vmem:[%s3 + $0x70] sm:$0xff]
  %v130 = vld [vmem:[%s3 + $0x78] sm:$0xff]
  %v131 = vld [vmem:[%s4] sm:$0x1]
  %v133 = vlaneseq
  %v134 = vshrl.u32 %v133, 7
  %v135 = vsub.s32 0, %v134
  %v136 = vrot.slane %v131, %v135
  %138 = vmatprep.subr.mxu0 0.0
  %139 = vmatpush1.msra.mxu0 %v130
  %140 = vmatprep.subr.mxu0 0.0
  %141 = vmatpush1.msra.mxu0 %v129
  %142 = vmatprep.subr.mxu0 0.0
  %143 = vmatpush1.msra.mxu0 %v128
  %144 = vmatprep.subr.mxu0 0.0
  %145 = vmatpush1.msra.mxu0 %v127
  %146 = vmatprep.subr.mxu0 0.0
  %147 = vmatpush1.msra.mxu0 %v126
  %148 = vmatprep.subr.mxu0 0.0
  %149 = vmatpush1.msra.mxu0 %v125
  %150 = vmatprep.subr.mxu0 0.0
  %151 = vmatpush1.msra.mxu0 %v124
  %152 = vmatprep.subr.mxu0 0.0
  %153 = vmatpush1.msra.mxu0 %v123
  %154 = vmatprep.subr.mxu0 0.0
  %155 = vmatpush1.msra.mxu0 %v122
  %156 = vmatprep.subr.mxu0 0.0
  %157 = vmatpush1.msra.mxu0 %v121
  %158 = vmatprep.subr.mxu0 0.0
  %159 = vmatpush1.msra.mxu0 %v120
  %160 = vmatprep.subr.mxu0 0.0
  %161 = vmatpush1.msra.mxu0 %v119
  %162 = vmatprep.subr.mxu0 0.0
  %163 = vmatpush1.msra.mxu0 %v118
  %164 = vmatprep.subr.mxu0 0.0
  %165 = vmatpush1.msra.mxu0 %v117
  %166 = vmatprep.subr.mxu0 0.0
  %167 = vmatpush1.msra.mxu0 %v116
  %168 = vmatprep.subr.mxu0 0.0
  %169 = vmatpush1.msra.mxu0 %v115
  %170 = vmatprep.subr.mxu0 0.0
  %171 = vmatpush2.msra.mxu0 0.0
  %172 = vmatprep.subr.mxu0 0.0
  %173 = vmatpush2.msra.mxu0 0.0
  %174 = vmatprep.subr.mxu0 0.0
  %175 = vmatpush2.msra.mxu0 0.0
  %176 = vmatprep.subr.mxu0 0.0
  %177 = vmatpush2.msra.mxu0 0.0
  %178 = vmatprep.subr.mxu0 0.0
  %179 = vmatpush2.msra.mxu0 0.0
  %180 = vmatprep.subr.mxu0 0.0
  %181 = vmatpush2.msra.mxu0 0.0
  %182 = vmatprep.subr.mxu0 0.0
  %183 = vmatpush2.msra.mxu0 0.0
  %184 = vmatprep.subr.mxu0 0.0
  %185 = vmatpush2.msra.mxu0 0.0
  %186 = vmatprep.subr.mxu0 0.0
  %187 = vmatpush2.msra.mxu0 0.0
  %188 = vmatprep.subr.mxu0 0.0
  %189 = vmatpush2.msra.mxu0 0.0
  %190 = vmatprep.subr.mxu0 0.0
  %191 = vmatpush2.msra.mxu0 0.0
  %192 = vmatprep.subr.mxu0 0.0
  %193 = vmatpush2.msra.mxu0 0.0
  %194 = vmatprep.subr.mxu0 0.0
  %195 = vmatpush2.msra.mxu0 0.0
  %196 = vmatprep.subr.mxu0 0.0
  %197 = vmatpush2.msra.mxu0 0.0
  %198 = vmatprep.subr.mxu0 0.0
  %199 = vmatpush2.msra.mxu0 0.0
  %200 = vmatprep.subr.mxu0 0.0
  %201 = vmatpush2.msra.mxu0 0.0
  %202 = vmatprep.mubr.f32.mxu0 0.0
  %203 = vmatmul.mubr.f32.gmra.mxu0 %v114
  %v204 = vpop.f32.mrf.mxu0
  %v205 = vadd.f32 %v136, %v204
  %v206 = vpop.f32.mrf.mxu0
  %207 = vdwg.mxu0
  %208 = vst [vmem:[%s5] sm:$0xff] %v205
  // Predicated region
  $region22: #{classification_forward.1} parent=0 // pred_check
    _
  $region23: #{classification_forward.1} parent=0 // pred_check_branch
    %210 = sbr.rel (0) target = $region25
  $region24: #{classification_forward.1} parent=0 // pred_region
    _
  $region25: #{classification_forward.1} parent=0 // pred_fallthru
    _
  // Predicated region
  $region26: #{classification_forward.1} parent=0 // pred_check
    _
  $region27: #{classification_forward.1} parent=0 // pred_check_branch
    %212 = sbr.rel (0) target = $region29
  $region28: #{classification_forward.1} parent=0 // pred_region
    _
  $region29: #{classification_forward.1} parent=0 // pred_fallthru
    _

</llo_original>
